<compile_context>
chip_gen: v7x
topology: tpu7x:2x2x1
jax: 0.10.0
libtpu: 0.0.40
codegen_flags: <defaults>
</compile_context>

<pallas_src>
import jax
import jax.numpy as jnp
from jax import lax
from jax.experimental import pallas as pl
from jax.experimental.pallas import tpu as pltpu


def _round_up(x: int, m: int) -> int:
    return (x + m - 1) // m * m


def _tpu_generation() -> int:
    try:
        kind = jax.devices()[0].device_kind.lower()
    except Exception:
        return 6
    for g in (7, 6, 5, 4):
        if f"v{g}" in kind:
            return g
    return 6


# Per-generation default tiles (tn/tk stay 256-multiples when they actually
# split a large N/K, matching the 256x256 MXU on v6e/v7x).
_TILES = {
    4: dict(tm=512, tn=1024, tk=1024),
    5: dict(tm=512, tn=512, tk=1024),
    6: dict(tm=1024, tn=2048, tk=2048),
    7: dict(tm=512, tn=1024, tk=1024),
}


def _row_linear_kernel(x_ref, w_ref, o_ref, acc_ref):
    # x_ref: (tm, tk), w_ref: (tk, tn) — weight already stored as (K, N) —
    # o_ref: (tm, tn), acc_ref: (tm, tn) f32.
    k = pl.program_id(2)

    @pl.when(k == 0)
    def _():
        acc_ref[...] = jnp.zeros_like(acc_ref)

    acc_ref[...] += jnp.dot(x_ref[...], w_ref[...], preferred_element_type=jnp.float32)

    @pl.when(k == pl.num_programs(2) - 1)
    def _():
        o_ref[...] = acc_ref[...].astype(o_ref.dtype)


class ParallelLinear1DRow:
    """y = x @ weight.T with weight stored (N, K), matching the PyTorch module.

    The weight is padded + transposed to (Kp, Np) once at construction so the
    per-call hot path only (optionally) pads x.
    """

    def __init__(self, weight, *, tm=None, tn=None, tk=None):
        N, K = weight.shape
        self.N, self.K = N, K
        self.gen = _tpu_generation()
        tbl = _TILES.get(self.gen, _TILES[6])

        # Clamp N/K tiles to the (128-aligned) problem size; large dims keep the
        # generation-specific 256-multiple defaults.
        self.tn = tn if tn is not None else min(tbl["tn"], _round_up(N, 128))
        self.tk = tk if tk is not None else min(tbl["tk"], _round_up(K, 128))
        self.tm_default = tm if tm is not None else tbl["tm"]

        Np = _round_up(N, self.tn)
        Kp = _round_up(K, self.tk)

        # One-time pad + transpose (hoisted out of the per-call hot path).
        w_kn = jnp.swapaxes(weight, 0, 1)  # (K, N)
        if (Kp, Np) != (K, N):
            w_kn = jnp.pad(w_kn, ((0, Kp - K), (0, Np - N)))
        self.w_kn = w_kn
        self.Np, self.Kp = Np, Kp

    def __call__(self, x):
        *lead, K = x.shape
        assert K == self.K, f"in-dim mismatch: {K} vs {self.K}"
        x2d = x.reshape(-1, K)
        M = x2d.shape[0]

        tn, tk = self.tn, self.tk
        tm = max(8, min(_round_up(self.tm_default, 8), _round_up(M, 8)))
        Mp = _round_up(M, tm)
        Np, Kp = self.Np, self.Kp

        # v7x has 2 TensorCores: if the parallel (M, N) grid collapsed to a
        # single tile, split the N tile so both cores get work.
        if self.gen >= 7 and Mp // tm == 1 and Np // tn == 1 and Np % 256 == 0:
            tn = Np // 2

        # Zero-pad ragged x dims (zeros contribute nothing; padded K rows of the
        # weight are zero too). Weight padding was done once at init.
        if (Mp, Kp) != (M, K):
            x2d = jnp.pad(x2d, ((0, Mp - M), (0, Kp - K)))

        grid = (Mp // tm, Np // tn, Kp // tk)

        xb = x2d.dtype.itemsize
        wb = self.w_kn.dtype.itemsize
        ob = jnp.dtype(x.dtype).itemsize
        cost = pl.CostEstimate(
            flops=2 * Mp * Np * Kp,
            transcendentals=0,
            # x is re-read once per N tile, the weight once per M tile.
            bytes_accessed=(Mp * Kp * xb) * grid[1]
            + (Kp * Np * wb) * grid[0]
            + Mp * Np * ob,
        )

        # Double-buffered inputs/output + f32 accumulator, with headroom for
        # compiler-internal scratch; capped below physical VMEM per generation
        # (v5e's scoped default is only 16 MiB, so always raise it).
        buf_bytes = 2 * tm * tk * xb + 2 * tk * tn * wb + 2 * tm * tn * ob + tm * tn * 4
        vmem_cap = (56 << 20) if self.gen >= 7 else (100 << 20)
        vmem_limit = max(32 << 20, min(vmem_cap, int(buf_bytes * 1.25) + (8 << 20)))

        out2d = pl.pallas_call(
            _row_linear_kernel,
            out_shape=jax.ShapeDtypeStruct((Mp, Np), x.dtype),
            grid_spec=pltpu.PrefetchScalarGridSpec(
                num_scalar_prefetch=0,
                grid=grid,
                in_specs=[
                    pl.BlockSpec((tm, tk), lambda i, j, k: (i, k)),  # x tile
                    pl.BlockSpec((tk, tn), lambda i, j, k: (k, j)),  # weight (K,N) tile
                ],
                out_specs=pl.BlockSpec((tm, tn), lambda i, j, k: (i, j)),
                scratch_shapes=[pltpu.VMEM((tm, tn), jnp.float32)],
            ),
            compiler_params=pltpu.CompilerParams(
                dimension_semantics=("parallel", "parallel", "arbitrary"),
                vmem_limit_bytes=vmem_limit,
            ),
            cost_estimate=cost,
        )(x2d, self.w_kn)

        out2d = out2d[:M, : self.N]
        return out2d.reshape(*lead, self.N)


def parallel_linear1d_row(x, weight, **tile_kwargs):
    """One-off functional form (re-pads the weight per call; prefer the class)."""
    return ParallelLinear1DRow(weight, **tile_kwargs)(x)


if __name__ == "__main__":
    # Module config (small, consistent with the PyTorch __init__):
    in_features = 64
    num_parallel = 2
    out_features = 128
    K = in_features // num_parallel  # input_size_per_partition = 32

    key = jax.random.PRNGKey(0)
    k_x, k_w, k_b, k_x2, k_w2 = jax.random.split(key, 5)

    # Deterministic synthetic parameters (torch.randn analogue)
    weight = jax.random.normal(k_w, (out_features, K), dtype=jnp.float32)
    bias = jax.random.normal(k_b, (out_features,), dtype=jnp.float32)  # present but unused
    # TODO(synk): the module allocates bias but forward calls F.linear(x, weight)
    # without it, so the kernel intentionally does not add bias.

    layer = ParallelLinear1DRow(weight)          # one-time pad+transpose of weight
    fwd = jax.jit(layer.__call__)

    # Example input: (batch=2, seq=8, K=32)
    x = jax.random.normal(k_x, (2, 8, K), dtype=jnp.float32)
    out = fwd(x)
    jax.block_until_ready(out)

    ref = jnp.einsum("bsk,nk->bsn", x, weight, precision=lax.Precision.HIGHEST)
    assert out.shape == (2, 8, out_features)
    assert jnp.allclose(out, ref, atol=1e-3, rtol=1e-3)

    # Second check: bf16 operands, K-axis accumulation, multi-tile M/N grid and
    # ragged-M padding (M = 3*7 = 21 -> padded to a tile multiple).
    K2, N2 = 384, 256
    w2 = jax.random.normal(k_w2, (N2, K2), dtype=jnp.float32).astype(jnp.bfloat16)
    x2 = jax.random.normal(k_x2, (3, 7, K2), dtype=jnp.float32).astype(jnp.bfloat16)
    layer2 = ParallelLinear1DRow(w2, tm=16, tn=128, tk=128)
    out2 = jax.jit(layer2.__call__)(x2)
    jax.block_until_ready(out2)

    ref2 = jnp.einsum(
        "bsk,nk->bsn",
        x2.astype(jnp.float32),
        w2.astype(jnp.float32),
        precision=lax.Precision.HIGHEST,
    )
    assert out2.shape == (3, 7, N2)
    assert jnp.allclose(out2.astype(jnp.float32), ref2, atol=0.5, rtol=2e-2)

    print("KERNEL_OK")
</pallas_src>

<mosaic_0001>
module attributes {stable_mosaic.version = 11 : i64} {
  func.func @_row_linear_kernel(%arg0: i32, %arg1: i32, %arg2: i32, %arg3: memref<16x128xf32, #tpu.memory_space<vmem>>, %arg4: memref<128x128xf32, #tpu.memory_space<vmem>>, %arg5: memref<16x128xf32, #tpu.memory_space<vmem>>, %arg6: memref<16x128xf32, #tpu.memory_space<vmem>>) attributes {dimension_semantics = [#tpu.dimension_semantics<parallel>, #tpu.dimension_semantics<parallel>, #tpu.dimension_semantics<arbitrary>], iteration_bounds = array<i64: 1, 1, 1>, scalar_prefetch = 0 : i64, scratch_operands = 1 : i64, tpu.core_type = #tpu.core_type<tc>, window_params = [{transform_indices = @transform_0, window_bounds = array<i64: 16, 128>}, {transform_indices = @transform_1, window_bounds = array<i64: 128, 128>}, {transform_indices = @transform_2, window_bounds = array<i64: 16, 128>}]} {
    %c0_i32 = arith.constant 0 : i32
    %0 = arith.cmpi eq, %arg2, %c0_i32 : i32
    %1 = arith.extui %0 : i1 to i32
    %c0_i32_0 = arith.constant 0 : i32
    %2 = arith.cmpi ne, %1, %c0_i32_0 : i32
    scf.if %2 {
      %cst_10 = arith.constant 0.000000e+00 : f32
      %12 = vector.broadcast %cst_10 : f32 to vector<16x128xf32>
      %c0_11 = arith.constant 0 : index
      %c0_12 = arith.constant 0 : index
      %13 = vector.load %arg6[%c0_11, %c0_12] : memref<16x128xf32, #tpu.memory_space<vmem>>, vector<16x128xf32>
      tpu.vector_store %arg6[%c0_11, %c0_12], %12 {strides = array<i32>} : memref<16x128xf32, #tpu.memory_space<vmem>>, vector<16x128xf32>,
    } else {
    }
    %c0 = arith.constant 0 : index
    %c0_1 = arith.constant 0 : index
    %3 = vector.load %arg6[%c0, %c0_1] : memref<16x128xf32, #tpu.memory_space<vmem>>, vector<16x128xf32>
    %c0_2 = arith.constant 0 : index
    %c0_3 = arith.constant 0 : index
    %4 = vector.load %arg3[%c0_2, %c0_3] : memref<16x128xf32, #tpu.memory_space<vmem>>, vector<16x128xf32>
    %c0_4 = arith.constant 0 : index
    %c0_5 = arith.constant 0 : index
    %5 = vector.load %arg4[%c0_4, %c0_5] : memref<128x128xf32, #tpu.memory_space<vmem>>, vector<128x128xf32>
    %cst = arith.constant dense<0.000000e+00> : vector<16x128xf32>
    %6 = tpu.matmul %4, %5, %cst {dimension_numbers = #tpu.dot_dimension_numbers<[1], [0], [0], [1], [0, 0, 1, 1], [], []>} : vector<16x128xf32>, vector<128x128xf32>, vector<16x128xf32> -> vector<16x128xf32>
    %7 = arith.addf %3, %6 : vector<16x128xf32>
    %c0_6 = arith.constant 0 : index
    %c0_7 = arith.constant 0 : index
    %8 = vector.load %arg6[%c0_6, %c0_7] : memref<16x128xf32, #tpu.memory_space<vmem>>, vector<16x128xf32>
    tpu.vector_store %arg6[%c0_6, %c0_7], %7 {strides = array<i32>} : memref<16x128xf32, #tpu.memory_space<vmem>>, vector<16x128xf32>,
    %c0_i32_8 = arith.constant 0 : i32
    %9 = arith.cmpi eq, %arg2, %c0_i32_8 : i32
    %10 = arith.extui %9 : i1 to i32
    %c0_i32_9 = arith.constant 0 : i32
    %11 = arith.cmpi ne, %10, %c0_i32_9 : i32
    scf.if %11 {
      %c0_10 = arith.constant 0 : index
      %c0_11 = arith.constant 0 : index
      %12 = vector.load %arg6[%c0_10, %c0_11] : memref<16x128xf32, #tpu.memory_space<vmem>>, vector<16x128xf32>
      %c0_12 = arith.constant 0 : index
      %c0_13 = arith.constant 0 : index
      %13 = vector.load %arg5[%c0_12, %c0_13] : memref<16x128xf32, #tpu.memory_space<vmem>>, vector<16x128xf32>
      tpu.vector_store %arg5[%c0_12, %c0_13], %12 {strides = array<i32>} : memref<16x128xf32, #tpu.memory_space<vmem>>, vector<16x128xf32>,
    } else {
    }
    return
  }
  func.func @transform_0(%arg0: i32, %arg1: i32, %arg2: i32) -> (i32, i32) {
    %c0_i32 = arith.constant 0 : i32
    return %arg0, %arg2 : i32, i32
  }
  func.func @transform_1(%arg0: i32, %arg1: i32, %arg2: i32) -> (i32, i32) {
    %c0_i32 = arith.constant 0 : i32
    return %arg2, %arg1 : i32, i32
  }
  func.func @transform_2(%arg0: i32, %arg1: i32, %arg2: i32) -> (i32, i32) {
    %c0_i32 = arith.constant 0 : i32
    return %arg0, %arg1 : i32, i32
  }
}

</mosaic_0001>

<llo_original>
// kernel: a_call__.1
$region0: #{a_call__.1}
  #allocation0 [shape = 'u32[]', space=smem, size = 0x4, offset = 0x4, fixed_abs, tag = 'smem constant byte address 0x4 - core index']
  #allocation1 [shape = 'u32[144,128]{1,0:T(1,128)}', space=vmem, size = 0x12000, scoped, tag = 'internal scratch']
  #allocation2 [shape = 'f32[16,128]{1,0:T(8,128)}', space=vmem, size = 0x2000, scoped, tag = 'scratch operand']
  %s0 = inlined_call_operand.vmem [shape: f32[16,128], index: 0, kind: input, shape index: {}]
  %s1 = inlined_call_operand.hbm [shape: f32[128,128], index: 1, kind: input, shape index: {}]
  %s2 = inlined_call_operand.hbm [shape: f32[16,128], index: 2, kind: output, shape index: {}]
  %s3 = sld [smem:[#allocation0]]
  $region30: #{a_call__.1} parent=0
    _
  %s5 = ssub.s32 1, %s3
  %s6 = scalar_select 0, %s5, %s3
  $region1: #{a_call__.1} parent=0
    #allocation3 [shape = 'u8[65536]{0}', space=vmem, size = 0x10000, scoped, tag = 'input window, operand 1, single buffered']
    #allocation4 [shape = 's32[1]{0}', space=sflag, size = 0x4, scoped, tag = 'scoped memory for a_call__.1']
    #allocation5 [shape = 's32[1]{0}', space=sflag, size = 0x4, scoped, tag = 'scoped memory for a_call__.1']
    #allocation6 [shape = 'u8[8192]{0}', space=vmem, size = 0x2000, scoped, tag = 'output window, operand 0, single buffered']
    %7 = vsyncpa [#allocation4], 0
    %8 = vsyncpa [#allocation5], 0
    // Predicated region
    $region2: #{a_call__.1} parent=1 // pred_check
      _
    $region3: #{a_call__.1} parent=1 // pred_check_branch
      %10 = sbr.rel (0) target = $region5
    $region4: #{a_call__.1} parent=1 // pred_region
      _
    $region5: #{a_call__.1} parent=1 // pred_fallthru
      _
    // Predicated region
    $region6: #{a_call__.1} parent=1 // pred_check
      _
    $region7: #{a_call__.1} parent=1 // pred_check_branch
      %12 = sbr.rel (0) target = $region9
    $region8: #{a_call__.1} parent=1 // pred_region
      %s14 = ssub.s32 2048, 2048
      %15 = vsyncadd [#allocation4], %s14
      %s16 = sshll.u32 [#allocation3], 4
      %s17 = int_to_ptr.vmem [resolvable:$true] %s16
      %22 = dma.hbm_to_vmem [thread:$0]  %s1, 2048, %s17, [#allocation4], 128, 128, 8
    $region9: #{a_call__.1} parent=1 // pred_fallthru
      _
    // Predicated region
    $region10: #{a_call__.1} parent=1 // pred_check
      _
    $region11: #{a_call__.1} parent=1 // pred_check_branch
      %24 = sbr.rel (0) target = $region13
    $region12: #{a_call__.1} parent=1 // pred_region
      %25 = dma.done [#allocation4], 2048
    $region13: #{a_call__.1} parent=1 // pred_fallthru
      _
    %p26 = scmp.eq.s32.totalorder 0, 0
    // Predicated region
    $region14: #{a_call__.1} parent=1 // pred_check
      %p27 = pneg %p26
    $region15: #{a_call__.1} parent=1 // pred_check_branch
      %29 = sbr.rel (%p27) target = $region17
    $region16: #{a_call__.1} parent=1 // pred_region
      %30 = vst [vmem:[#allocation2] sm:$0xff] 0.0
      %31 = vst [vmem:[#allocation2 + $0x8] sm:$0xff] 0.0
    $region17: #{a_call__.1} parent=1 // pred_fallthru
      _
    %v32 = vld [vmem:[#allocation2] sm:$0xff]
    %v33 = vld [vmem:[#allocation2 + $0x8] sm:$0xff]
    %v34 = vld [vmem:[%s0] sm:$0xff]
    %v35 = vld [vmem:[%s0 + $0x8] sm:$0xff]
    %v36 = vld [vmem:[#allocation3] sm:$0xff]
    %v37 = vld [vmem:[#allocation3 + $0x8] sm:$0xff]
    %v38 = vld [vmem:[#allocation3 + $0x10] sm:$0xff]
    %v39 = vld [vmem:[#allocation3 + $0x18] sm:$0xff]
    %v40 = vld [vmem:[#allocation3 + $0x20] sm:$0xff]
    %v41 = vld [vmem:[#allocation3 + $0x28] sm:$0xff]
    %v42 = vld [vmem:[#allocation3 + $0x30] sm:$0xff]
    %v43 = vld [vmem:[#allocation3 + $0x38] sm:$0xff]
    %v44 = vld [vmem:[#allocation3 + $0x40] sm:$0xff]
    %v45 = vld [vmem:[#allocation3 + $0x48] sm:$0xff]
    %v46 = vld [vmem:[#allocation3 + $0x50] sm:$0xff]
    %v47 = vld [vmem:[#allocation3 + $0x58] sm:$0xff]
    %v48 = vld [vmem:[#allocation3 + $0x60] sm:$0xff]
    %v49 = vld [vmem:[#allocation3 + $0x68] sm:$0xff]
    %v50 = vld [vmem:[#allocation3 + $0x70] sm:$0xff]
    %v51 = vld [vmem:[#allocation3 + $0x78] sm:$0xff]
    %52 = vmatprep.subr.mxu0 0.0
    %53 = vmatpush1.msra.mxu0 %v36
    %54 = vmatprep.subr.mxu0 0.0
    %55 = vmatpush1.msra.mxu0 %v37
    %56 = vmatprep.subr.mxu0 0.0
    %57 = vmatpush1.msra.mxu0 %v38
    %58 = vmatprep.subr.mxu0 0.0
    %59 = vmatpush1.msra.mxu0 %v39
    %60 = vmatprep.subr.mxu0 0.0
    %61 = vmatpush1.msra.mxu0 %v40
    %62 = vmatprep.subr.mxu0 0.0
    %63 = vmatpush1.msra.mxu0 %v41
    %64 = vmatprep.subr.mxu0 0.0
    %65 = vmatpush1.msra.mxu0 %v42
    %66 = vmatprep.subr.mxu0 0.0
    %67 = vmatpush1.msra.mxu0 %v43
    %68 = vmatprep.subr.mxu0 0.0
    %69 = vmatpush1.msra.mxu0 %v44
    %70 = vmatprep.subr.mxu0 0.0
    %71 = vmatpush1.msra.mxu0 %v45
    %72 = vmatprep.subr.mxu0 0.0
    %73 = vmatpush1.msra.mxu0 %v46
    %74 = vmatprep.subr.mxu0 0.0
    %75 = vmatpush1.msra.mxu0 %v47
    %76 = vmatprep.subr.mxu0 0.0
    %77 = vmatpush1.msra.mxu0 %v48
    %78 = vmatprep.subr.mxu0 0.0
    %79 = vmatpush1.msra.mxu0 %v49
    %80 = vmatprep.subr.mxu0 0.0
    %81 = vmatpush1.msra.mxu0 %v50
    %82 = vmatprep.subr.mxu0 0.0
    %83 = vmatpush1.msra.mxu0 %v51
    %84 = vmatprep.subr.mxu0 0.0
    %85 = vmatpush1.msra.mxu0 0.0
    %86 = vmatprep.subr.mxu0 0.0
    %87 = vmatpush1.msra.mxu0 0.0
    %88 = vmatprep.subr.mxu0 0.0
    %89 = vmatpush1.msra.mxu0 0.0
    %90 = vmatprep.subr.mxu0 0.0
    %91 = vmatpush1.msra.mxu0 0.0
    %92 = vmatprep.subr.mxu0 0.0
    %93 = vmatpush1.msra.mxu0 0.0
    %94 = vmatprep.subr.mxu0 0.0
    %95 = vmatpush1.msra.mxu0 0.0
    %96 = vmatprep.subr.mxu0 0.0
    %97 = vmatpush1.msra.mxu0 0.0
    %98 = vmatprep.subr.mxu0 0.0
    %99 = vmatpush1.msra.mxu0 0.0
    %100 = vmatprep.subr.mxu0 0.0
    %101 = vmatpush1.msra.mxu0 0.0
    %102 = vmatprep.subr.mxu0 0.0
    %103 = vmatpush1.msra.mxu0 0.0
    %104 = vmatprep.subr.mxu0 0.0
    %105 = vmatpush1.msra.mxu0 0.0
    %106 = vmatprep.subr.mxu0 0.0
    %107 = vmatpush1.msra.mxu0 0.0
    %108 = vmatprep.subr.mxu0 0.0
    %109 = vmatpush1.msra.mxu0 0.0
    %110 = vmatprep.subr.mxu0 0.0
    %111 = vmatpush1.msra.mxu0 0.0
    %112 = vmatprep.subr.mxu0 0.0
    %113 = vmatpush1.msra.mxu0 0.0
    %114 = vmatprep.subr.mxu0 0.0
    %115 = vmatpush1.msra.mxu0 0.0
    %116 = vmatprep.mubr.f32.mxu0 0.0
    %117 = vmatmul.mubr.f32.gmra.mrb[0].mxu0 %v34
    %v118 = vpop.f32.mrb[0].mxu0
    %v119 = vadd.f32 0.0, %v118
    %v120 = vpop.f32.mrb[0].mxu0
    %121 = vmatprep.mubr.f32.mxu0 0.0
    %122 = vmatmul.mubr.f32.gmra.mrb[0].mxu0 %v35
    %v123 = vpop.f32.mrb[0].mxu0
    %v124 = vadd.f32 0.0, %v123
    %v125 = vpop.f32.mrb[0].mxu0
    %126 = vdwg.mxu0
    %v127 = vadd.f32 %v32, %v119
    %v128 = vadd.f32 %v33, %v124
    %129 = vst [vmem:[#allocation2] sm:$0xff] %v127
    %130 = vst [vmem:[#allocation2 + $0x8] sm:$0xff] %v128
    // Predicated region
    $region18: #{a_call__.1} parent=1 // pred_check
      %p131 = pneg %p26
    $region19: #{a_call__.1} parent=1 // pred_check_branch
      %133 = sbr.rel (%p131) target = $region21
    $region20: #{a_call__.1} parent=1 // pred_region
      %v134 = vld [vmem:[#allocation2] sm:$0xff]
      %v135 = vld [vmem:[#allocation2 + $0x8] sm:$0xff]
      %136 = vst [vmem:[#allocation6] sm:$0xff] %v134
      %137 = vst [vmem:[#allocation6 + $0x8] sm:$0xff] %v135
    $region21: #{a_call__.1} parent=1 // pred_fallthru
      _
    // Predicated region
    $region22: #{a_call__.1} parent=1 // pred_check
      _
    $region23: #{a_call__.1} parent=1 // pred_check_branch
      %139 = sbr.rel (0) target = $region25
    $region24: #{a_call__.1} parent=1 // pred_region
      %s141 = ssub.s32 256, 256
      %142 = vsyncadd [#allocation5], %s141
      %s143 = sshll.u32 [#allocation6], 4
      %s144 = int_to_ptr.vmem [resolvable:$true] %s143
      %149 = dma.vmem_to_hbm [thread:$0]  %s144, 256, %s2, [#allocation5], 128, 128, 8
    $region25: #{a_call__.1} parent=1 // pred_fallthru
      _
    // Predicated region
    $region26: #{a_call__.1} parent=1 // pred_check
      _
    $region27: #{a_call__.1} parent=1 // pred_check_branch
      %151 = sbr.rel (0) target = $region29
    $region28: #{a_call__.1} parent=1 // pred_region
      %152 = dma.done [#allocation5], 256
    $region29: #{a_call__.1} parent=1 // pred_fallthru
      _
    %153 = vsyncpa [#allocation4], 1
    %154 = vsyncpa [#allocation5], 1

</llo_original>
